<compile_context>
chip_gen: v5e
topology: v5e:2x2
jax: 0.10.0
libtpu: 0.0.40
codegen_flags: <defaults>
</compile_context>

<pallas_src>
import functools

import jax
import jax.numpy as jnp
from jax.experimental import pallas as pl
from jax.experimental.pallas import tpu as pltpu

NUM_SLOTS = 6


def _round_up(x, m):
    return ((x + m - 1) // m) * m


def mtransh_kernel(r_ref, norm_ref, e_ref, scale_ref, out_ref, *, lane_scale):
    # r_ref:     (Bt, D)       R1[r_idx]
    # norm_ref:  (Bt, D)       R2[r_idx]   (hyperplane normal)
    # e_ref:     (6, Bt, D)    E[e_k_idx]
    # scale_ref: (1, 6, Bt) if lane_scale else (Bt, 6)   b_k[r_idx] * ms[:, k]
    # out_ref:   (Bt, 1)       -||x||_2
    norm = norm_ref[...]
    if lane_scale:
        scale = scale_ref[0].T            # (6, Bt) -> (Bt, 6): one XLU transpose
    else:
        scale = scale_ref[...]            # (Bt, 6) (lane-padded VMEM tile)

    # Weighted slot sum: 6 VPU FMAs, no cross-lane work inside the loop.
    ws = e_ref[0] * scale[:, 0:1]
    for k in range(1, NUM_SLOTS):
        ws = ws + e_ref[k] * scale[:, k:k + 1]

    # Dot products are linear, so the six per-slot hyperplane projections
    # collapse into one:  sum_k s_k*(e_k - (e_k.n)n) == ws - (ws.n)n.
    x = r_ref[...] + ws - jnp.sum(ws * norm, axis=1, keepdims=True) * norm

    # hidden_drop (Dropout) is identity in eval mode.
    out_ref[...] = -jnp.sqrt(jnp.sum(x * x, axis=1, keepdims=True))


def _vmem_budget_bytes():
    """~3/4 of per-core VMEM; conservative v7x default (64 MiB/TC) on failure."""
    try:
        cap = getattr(pltpu.get_tpu_info(), "vmem_capacity_bytes", 64 << 20)
    except Exception:  # defensive: keep the kernel usable anywhere
        cap = 64 << 20
    return min((cap * 3) // 4, 96 << 20)


def _choose_block(B, D, block_cap, vmem_budget):
    """Batch tile: big enough to hide ~0.35us/step pipeline overhead, small
    enough to double-buffer in VMEM, leaving >= 4 grid blocks for megacore."""
    Dp = _round_up(D, 128)                       # lane-padded width in VMEM
    per_row = 2 * 4 * (8 * Dp + 256)             # 2 bufs x f32 x (r + n + 6e + aux)
    cap = max(8, min(block_cap, (vmem_budget - (4 << 20)) // per_row))
    bt = min(cap, max(8, -(-B // 4)))            # aim for >= 4 grid steps
    bt = (bt // 128) * 128 if bt >= 128 else _round_up(bt, 8)
    return min(bt, _round_up(B, 8))


def mtransh_forward(r_emb, norm_emb, e_stack, scale, *, block_b=8192):
    """r_emb/norm_emb: (B, D) f32; e_stack: (6, B, D) f32; scale: (B, 6) f32.
    Returns (B,) f32 = -|| r + sum_k scale_k * proj_n(e_k) ||_2."""
    B, D = r_emb.shape
    budget = _vmem_budget_bytes()
    Bt = _choose_block(B, D, block_b, budget)
    nb = pl.cdiv(B, Bt)

    lane_scale = (Bt % 128 == 0)
    if lane_scale:
        # Tiny reorder (6*B floats) to a lane-dense (nb, 6, Bt) layout: one
        # contiguous burst per block instead of a 6->128 lane-padded tile.
        pad = nb * Bt - B
        s = jnp.pad(scale, ((0, pad), (0, 0))) if pad else scale
        scale_arg = s.reshape(nb, Bt, NUM_SLOTS).transpose(0, 2, 1)
        scale_spec = pl.BlockSpec((1, NUM_SLOTS, Bt), lambda i: (i, 0, 0))
    else:
        scale_arg = scale
        scale_spec = pl.BlockSpec((Bt, NUM_SLOTS), lambda i: (i, 0))

    out = pl.pallas_call(
        functools.partial(mtransh_kernel, lane_scale=lane_scale),
        out_shape=jax.ShapeDtypeStruct((B, 1), jnp.float32),
        grid=(nb,),
        in_specs=[
            pl.BlockSpec((Bt, D), lambda i: (i, 0)),
            pl.BlockSpec((Bt, D), lambda i: (i, 0)),
            pl.BlockSpec((NUM_SLOTS, Bt, D), lambda i: (0, i, 0)),
            scale_spec,
        ],
        out_specs=pl.BlockSpec((Bt, 1), lambda i: (i, 0)),
        compiler_params=pltpu.CompilerParams(
            dimension_semantics=("parallel",),
            vmem_limit_bytes=budget,
        ),
    )(r_emb, norm_emb, e_stack, scale_arg)
    return out[:, 0]


def build_params(key, num_ent, num_rel, emb_dim):
    """Deterministic synthetic parameters mirroring MTransH.init()."""
    ks = jax.random.split(key, 4)

    def table(k, n, d):
        w = jax.random.normal(k, (n, d), dtype=jnp.float32) * (2.0 / (n + d)) ** 0.5
        w = w / (jnp.linalg.norm(w, axis=1, keepdims=True) + 1e-12)
        return w.at[0].set(jnp.ones((d,), jnp.float32))

    E = table(ks[0], num_ent, emb_dim)
    R1 = table(ks[1], num_rel, emb_dim)
    R2 = table(ks[2], num_rel, emb_dim)
    b_all = jax.random.normal(ks[3], (num_rel, NUM_SLOTS), dtype=jnp.float32) * 0.5
    return E, R1, R2, b_all


def reference_forward(E, R1, R2, b_all, r_idx, e_idx, ms):
    """Plain-JAX replica of the PyTorch forward (eval mode)."""
    r = R1[r_idx]
    norm = R2[r_idx]
    x = r
    for k in range(NUM_SLOTS):
        e = E[e_idx[k]]
        proj = e - jnp.sum(e * norm, axis=1, keepdims=True) * norm
        x = x + proj * b_all[r_idx][:, k:k + 1] * ms[:, k:k + 1]
    return -jnp.linalg.norm(x, axis=1)


def run_case(key, B, D, num_ent, num_rel):
    kp, kr, ke, km = jax.random.split(key, 4)
    E, R1, R2, b_all = build_params(kp, num_ent, num_rel, D)
    r_idx = jax.random.randint(kr, (B,), 0, num_rel)
    e_idx = jax.random.randint(ke, (NUM_SLOTS, B), 0, num_ent)
    ms = (jax.random.uniform(km, (B, NUM_SLOTS)) > 0.3).astype(jnp.float32)

    # Glue: fused gathers in XLA, dense math in the Pallas kernel.
    r_emb = R1[r_idx]                    # (B, D)
    norm_emb = R2[r_idx]                 # (B, D)
    e_stack = E[e_idx]                   # (6, B, D)  single gather
    scale = b_all[r_idx] * ms            # (B, 6)     single gather, pre-multiplied

    out = jax.block_until_ready(mtransh_forward(r_emb, norm_emb, e_stack, scale))
    ref = reference_forward(E, R1, R2, b_all, r_idx, e_idx, ms)
    assert out.shape == (B,)
    assert jnp.allclose(out, ref, atol=1e-4, rtol=1e-4), (B, D, out, ref)


if __name__ == "__main__":
    key = jax.random.PRNGKey(0)
    k1, k2 = jax.random.split(key)
    # Small: ragged tail + (Bt, 6) fallback scale layout (Bt = 8, 2 blocks).
    run_case(k1, B=10, D=32, num_ent=20, num_rel=10)
    # Medium: multi-block grid, lane-dense D and lane-dense scale path
    # (Bt = 128, 5 blocks, ragged final block).
    run_case(k2, B=520, D=128, num_ent=100, num_rel=16)
    print("KERNEL_OK")
</pallas_src>

<mosaic_0001>
module attributes {stable_mosaic.version = 11 : i64} {
  func.func @mtransh_kernel(%arg0: i32, %arg1: memref<8x32xf32, #tpu.memory_space<vmem>>, %arg2: memref<8x32xf32, #tpu.memory_space<vmem>>, %arg3: memref<6x8x32xf32, #tpu.memory_space<vmem>>, %arg4: memref<8x6xf32, #tpu.memory_space<vmem>>, %arg5: memref<8x1xf32, #tpu.memory_space<vmem>>) attributes {dimension_semantics = [#tpu.dimension_semantics<parallel>], iteration_bounds = array<i64: 2>, scalar_prefetch = 0 : i64, scratch_operands = 0 : i64, tpu.core_type = #tpu.core_type<tc>, window_params = [{transform_indices = @transform_0, window_bounds = array<i64: 8, 32>}, {transform_indices = @transform_1, window_bounds = array<i64: 8, 32>}, {transform_indices = @transform_2, window_bounds = array<i64: 6, 8, 32>}, {transform_indices = @transform_3, window_bounds = array<i64: 8, 6>}, {transform_indices = @transform_4, window_bounds = array<i64: 8, 1>}]} {
    %c0 = arith.constant 0 : index
    %c0_0 = arith.constant 0 : index
    %0 = vector.load %arg2[%c0, %c0_0] : memref<8x32xf32, #tpu.memory_space<vmem>>, vector<8x32xf32>
    %c0_1 = arith.constant 0 : index
    %c0_2 = arith.constant 0 : index
    %1 = vector.load %arg4[%c0_1, %c0_2] : memref<8x6xf32, #tpu.memory_space<vmem>>, vector<8x6xf32>
    %c0_3 = arith.constant 0 : index
    %c0_4 = arith.constant 0 : index
    %c0_5 = arith.constant 0 : index
    %2 = vector.load %arg3[%c0_3, %c0_4, %c0_5] : memref<6x8x32xf32, #tpu.memory_space<vmem>>, vector<1x8x32xf32>
    %3 = vector.shape_cast %2 : vector<1x8x32xf32> to vector<8x32xf32>
    %4 = vector.extract_strided_slice %1 {offsets = [0, 0], sizes = [8, 1], strides = [1, 1]} : vector<8x6xf32> to vector<8x1xf32>
    %5 = vector.broadcast %4 : vector<8x1xf32> to vector<8x32xf32>
    %6 = arith.mulf %3, %5 : vector<8x32xf32>
    %c1 = arith.constant 1 : index
    %c0_6 = arith.constant 0 : index
    %c0_7 = arith.constant 0 : index
    %7 = vector.load %arg3[%c1, %c0_6, %c0_7] : memref<6x8x32xf32, #tpu.memory_space<vmem>>, vector<1x8x32xf32>
    %8 = vector.shape_cast %7 : vector<1x8x32xf32> to vector<8x32xf32>
    %9 = vector.extract_strided_slice %1 {offsets = [0, 1], sizes = [8, 1], strides = [1, 1]} : vector<8x6xf32> to vector<8x1xf32>
    %10 = vector.broadcast %9 : vector<8x1xf32> to vector<8x32xf32>
    %11 = arith.mulf %8, %10 : vector<8x32xf32>
    %12 = arith.addf %6, %11 : vector<8x32xf32>
    %c2 = arith.constant 2 : index
    %c0_8 = arith.constant 0 : index
    %c0_9 = arith.constant 0 : index
    %13 = vector.load %arg3[%c2, %c0_8, %c0_9] : memref<6x8x32xf32, #tpu.memory_space<vmem>>, vector<1x8x32xf32>
    %14 = vector.shape_cast %13 : vector<1x8x32xf32> to vector<8x32xf32>
    %15 = vector.extract_strided_slice %1 {offsets = [0, 2], sizes = [8, 1], strides = [1, 1]} : vector<8x6xf32> to vector<8x1xf32>
    %16 = vector.broadcast %15 : vector<8x1xf32> to vector<8x32xf32>
    %17 = arith.mulf %14, %16 : vector<8x32xf32>
    %18 = arith.addf %12, %17 : vector<8x32xf32>
    %c3 = arith.constant 3 : index
    %c0_10 = arith.constant 0 : index
    %c0_11 = arith.constant 0 : index
    %19 = vector.load %arg3[%c3, %c0_10, %c0_11] : memref<6x8x32xf32, #tpu.memory_space<vmem>>, vector<1x8x32xf32>
    %20 = vector.shape_cast %19 : vector<1x8x32xf32> to vector<8x32xf32>
    %21 = vector.extract_strided_slice %1 {offsets = [0, 3], sizes = [8, 1], strides = [1, 1]} : vector<8x6xf32> to vector<8x1xf32>
    %22 = vector.broadcast %21 : vector<8x1xf32> to vector<8x32xf32>
    %23 = arith.mulf %20, %22 : vector<8x32xf32>
    %24 = arith.addf %18, %23 : vector<8x32xf32>
    %c4 = arith.constant 4 : index
    %c0_12 = arith.constant 0 : index
    %c0_13 = arith.constant 0 : index
    %25 = vector.load %arg3[%c4, %c0_12, %c0_13] : memref<6x8x32xf32, #tpu.memory_space<vmem>>, vector<1x8x32xf32>
    %26 = vector.shape_cast %25 : vector<1x8x32xf32> to vector<8x32xf32>
    %27 = vector.extract_strided_slice %1 {offsets = [0, 4], sizes = [8, 1], strides = [1, 1]} : vector<8x6xf32> to vector<8x1xf32>
    %28 = vector.broadcast %27 : vector<8x1xf32> to vector<8x32xf32>
    %29 = arith.mulf %26, %28 : vector<8x32xf32>
    %30 = arith.addf %24, %29 : vector<8x32xf32>
    %c5 = arith.constant 5 : index
    %c0_14 = arith.constant 0 : index
    %c0_15 = arith.constant 0 : index
    %31 = vector.load %arg3[%c5, %c0_14, %c0_15] : memref<6x8x32xf32, #tpu.memory_space<vmem>>, vector<1x8x32xf32>
    %32 = vector.shape_cast %31 : vector<1x8x32xf32> to vector<8x32xf32>
    %33 = vector.extract_strided_slice %1 {offsets = [0, 5], sizes = [8, 1], strides = [1, 1]} : vector<8x6xf32> to vector<8x1xf32>
    %34 = vector.broadcast %33 : vector<8x1xf32> to vector<8x32xf32>
    %35 = arith.mulf %32, %34 : vector<8x32xf32>
    %36 = arith.addf %30, %35 : vector<8x32xf32>
    %c0_16 = arith.constant 0 : index
    %c0_17 = arith.constant 0 : index
    %37 = vector.load %arg1[%c0_16, %c0_17] : memref<8x32xf32, #tpu.memory_space<vmem>>, vector<8x32xf32>
    %38 = arith.addf %37, %36 : vector<8x32xf32>
    %39 = arith.mulf %36, %0 : vector<8x32xf32>
    %cst = arith.constant dense<0.000000e+00> : vector<8xf32>
    %40 = vector.multi_reduction <add>, %39, %cst [1] : vector<8x32xf32> to vector<8xf32>
    %41 = vector.shape_cast %40 : vector<8xf32> to vector<8x1xf32>
    %42 = vector.broadcast %41 : vector<8x1xf32> to vector<8x32xf32>
    %43 = arith.mulf %42, %0 : vector<8x32xf32>
    %44 = arith.subf %38, %43 : vector<8x32xf32>
    %45 = arith.mulf %44, %44 : vector<8x32xf32>
    %cst_18 = arith.constant dense<0.000000e+00> : vector<8xf32>
    %46 = vector.multi_reduction <add>, %45, %cst_18 [1] : vector<8x32xf32> to vector<8xf32>
    %47 = vector.shape_cast %46 : vector<8xf32> to vector<8x1xf32>
    %48 = math.sqrt %47 : vector<8x1xf32>
    %cst_19 = arith.constant 0.000000e+00 : f32
    %49 = vector.broadcast %cst_19 : f32 to vector<8x1xf32>
    %50 = arith.subf %49, %48 : vector<8x1xf32>
    %c0_20 = arith.constant 0 : index
    %c0_21 = arith.constant 0 : index
    %51 = vector.load %arg5[%c0_20, %c0_21] : memref<8x1xf32, #tpu.memory_space<vmem>>, vector<8x1xf32>
    tpu.vector_store %arg5[%c0_20, %c0_21], %50 {strides = array<i32>} : memref<8x1xf32, #tpu.memory_space<vmem>>, vector<8x1xf32>,
    return
  }
  func.func @transform_0(%arg0: i32) -> (i32, i32) {
    %c0_i32 = arith.constant 0 : i32
    %c0_i32_0 = arith.constant 0 : i32
    return %arg0, %c0_i32 : i32, i32
  }
  func.func @transform_1(%arg0: i32) -> (i32, i32) {
    %c0_i32 = arith.constant 0 : i32
    %c0_i32_0 = arith.constant 0 : i32
    return %arg0, %c0_i32 : i32, i32
  }
  func.func @transform_2(%arg0: i32) -> (i32, i32, i32) {
    %c0_i32 = arith.constant 0 : i32
    %c0_i32_0 = arith.constant 0 : i32
    %c0_i32_1 = arith.constant 0 : i32
    return %c0_i32, %arg0, %c0_i32_0 : i32, i32, i32
  }
  func.func @transform_3(%arg0: i32) -> (i32, i32) {
    %c0_i32 = arith.constant 0 : i32
    %c0_i32_0 = arith.constant 0 : i32
    return %arg0, %c0_i32 : i32, i32
  }
  func.func @transform_4(%arg0: i32) -> (i32, i32) {
    %c0_i32 = arith.constant 0 : i32
    %c0_i32_0 = arith.constant 0 : i32
    return %arg0, %c0_i32 : i32, i32
  }
}

</mosaic_0001>

<llo_original>
// kernel: tpu_custom_call.1
$region0: #{tpu_custom_call.1}
  #allocation0 [shape = 'u32[]', space=smem, size = 0x4, offset = 0x4, fixed_abs, tag = 'smem constant byte address 0x4 - core index']
  #allocation1 [shape = 'u32[72,128]{1,0:T(1,128)}', space=vmem, size = 0x9000, scoped, tag = 'internal scratch']
  %s0 = inlined_call_operand.vmem [shape: f32[10,32], index: 0, kind: input, shape index: {}]
  %s1 = inlined_call_operand.vmem [shape: f32[10,32], index: 1, kind: input, shape index: {}]
  %s2 = inlined_call_operand.vmem [shape: f32[6,10,32], index: 2, kind: input, shape index: {}]
  %s3 = inlined_call_operand.vmem [shape: f32[10,6], index: 3, kind: input, shape index: {}]
  %s4 = inlined_call_operand.vmem [shape: f32[10,1], index: 4, kind: output, shape index: {}]
  %s5 = sld [smem:[#allocation0]]
  $region87: #{tpu_custom_call.1} parent=0
    _
  %s7 = ssub.s32 1, %s5
  %s8 = scalar_select 0, %s7, %s5
  $region1: #{tpu_custom_call.1} parent=0
    #allocation2 [shape = 'u8[49152]{0}', space=vmem, size = 0xc000, scoped, tag = 'input window, operand 2']
    loop: start=0, step=1, limit=4
    $region2: #{tpu_custom_call.1} parent=1 // loop_pre_header
      _
    $region3: #{tpu_custom_call.1} parent=1 // loop_header
      %s10 = sphi 0, %s14
      %p11 = scmp.ge.s32.totalorder %s10, 4
      %s20 = sphi 0, %s22
      %s23 = sphi 0, %s20
      %s24 = sphi 0, %s23
      %s40 = sphi 0, %s24
      %s46 = sphi 0, %s48
      %s49 = sphi 0, %s46
      %s50 = sphi 0, %s49
      %s66 = sphi 0, %s50
      %s72 = sphi 0, %s74
      %s75 = sphi 0, %s72
      %s76 = sphi 0, %s75
      %s92 = sphi 0, %s76
      %s98 = sphi 0, %s100
      %s101 = sphi 0, %s98
      %s102 = sphi 0, %s101
      %s118 = sphi 0, %s102
      %s124 = sphi 0, %s126
      %s127 = sphi 0, %s124
      %s128 = sphi 0, %s127
      %s144 = sphi 0, %s128
    $region4: #{tpu_custom_call.1} parent=1 // loop_header_branch
      %13 = sbr.rel (%p11) target = $region8
    $region5: #{tpu_custom_call.1} parent=1 // loop_body
      %s15 = ssub.s32 %s10, 1
      %s16 = ssub.s32 %s10, 2
      %s17 = sadd.s32 %s10, 1
      %s18 = ssub.s32 %s10, %s17
      %p19 = scmp.eq.s32.totalorder %s18, 0
      %s21 = sadd.s32 %s20, 1
      %s22 = scalar_select %p19, %s20, %s21
      %p25 = pneg %p19
      %p26 = scmp.eq.s32.totalorder %s10, 1
      %p27 = por %p25, %p26
      %p28 = scmp.ne.s32.totalorder %s20, %s23
      %p29 = scmp.eq.s32.totalorder %s10, 0
      %p30 = por %p28, %p29
      %p31 = scmp.ne.s32.totalorder %s20, %s23
      %p32 = scmp.eq.s32.totalorder %s15, 1
      %p33 = por %p31, %p32
      %p34 = scmp.ne.s32.totalorder %s23, %s24
      %p35 = scmp.eq.s32.totalorder %s15, 0
      %p36 = por %p34, %p35
      %p37 = scmp.ne.s32.totalorder %s23, %s24
      %p38 = scmp.eq.s32.totalorder %s16, 1
      %p39 = por %p37, %p38
      %p41 = scmp.ne.s32.totalorder %s24, %s40
      %p42 = scmp.eq.s32.totalorder %s16, 0
      %p43 = por %p41, %p42
      %s44 = ssub.s32 %s10, %s17
      %p45 = scmp.eq.s32.totalorder %s44, 0
      %s47 = sadd.s32 %s46, 1
      %s48 = scalar_select %p45, %s46, %s47
      %p51 = pneg %p45
      %p52 = scmp.eq.s32.totalorder %s10, 1
      %p53 = por %p51, %p52
      %p54 = scmp.ne.s32.totalorder %s46, %s49
      %p55 = scmp.eq.s32.totalorder %s10, 0
      %p56 = por %p54, %p55
      %p57 = scmp.ne.s32.totalorder %s46, %s49
      %p58 = scmp.eq.s32.totalorder %s15, 1
      %p59 = por %p57, %p58
      %p60 = scmp.ne.s32.totalorder %s49, %s50
      %p61 = scmp.eq.s32.totalorder %s15, 0
      %p62 = por %p60, %p61
      %p63 = scmp.ne.s32.totalorder %s49, %s50
      %p64 = scmp.eq.s32.totalorder %s16, 1
      %p65 = por %p63, %p64
      %p67 = scmp.ne.s32.totalorder %s50, %s66
      %p68 = scmp.eq.s32.totalorder %s16, 0
      %p69 = por %p67, %p68
      %s70 = ssub.s32 %s10, %s17
      %p71 = scmp.eq.s32.totalorder %s70, 0
      %s73 = sadd.s32 %s72, 1
      %s74 = scalar_select %p71, %s72, %s73
      %p77 = pneg %p71
      %p78 = scmp.eq.s32.totalorder %s10, 1
      %p79 = por %p77, %p78
      %p80 = scmp.ne.s32.totalorder %s72, %s75
      %p81 = scmp.eq.s32.totalorder %s10, 0
      %p82 = por %p80, %p81
      %p83 = scmp.ne.s32.totalorder %s72, %s75
      %p84 = scmp.eq.s32.totalorder %s15, 1
      %p85 = por %p83, %p84
      %p86 = scmp.ne.s32.totalorder %s75, %s76
      %p87 = scmp.eq.s32.totalorder %s15, 0
      %p88 = por %p86, %p87
      %p89 = scmp.ne.s32.totalorder %s75, %s76
      %p90 = scmp.eq.s32.totalorder %s16, 1
      %p91 = por %p89, %p90
      %p93 = scmp.ne.s32.totalorder %s76, %s92
      %p94 = scmp.eq.s32.totalorder %s16, 0
      %p95 = por %p93, %p94
      %s96 = ssub.s32 %s10, %s17
      %p97 = scmp.eq.s32.totalorder %s96, 0
      %s99 = sadd.s32 %s98, 1
      %s100 = scalar_select %p97, %s98, %s99
      %p103 = pneg %p97
      %p104 = scmp.eq.s32.totalorder %s10, 1
      %p105 = por %p103, %p104
      %p106 = scmp.ne.s32.totalorder %s98, %s101
      %p107 = scmp.eq.s32.totalorder %s10, 0
      %p108 = por %p106, %p107
      %p109 = scmp.ne.s32.totalorder %s98, %s101
      %p110 = scmp.eq.s32.totalorder %s15, 1
      %p111 = por %p109, %p110
      %p112 = scmp.ne.s32.totalorder %s101, %s102
      %p113 = scmp.eq.s32.totalorder %s15, 0
      %p114 = por %p112, %p113
      %p115 = scmp.ne.s32.totalorder %s101, %s102
      %p116 = scmp.eq.s32.totalorder %s16, 1
      %p117 = por %p115, %p116
      %p119 = scmp.ne.s32.totalorder %s102, %s118
      %p120 = scmp.eq.s32.totalorder %s16, 0
      %p121 = por %p119, %p120
      %s122 = ssub.s32 %s10, %s17
      %p123 = scmp.eq.s32.totalorder %s122, 0
      %s125 = sadd.s32 %s124, 1
      %s126 = scalar_select %p123, %s124, %s125
      %p129 = pneg %p123
      %p130 = scmp.eq.s32.totalorder %s10, 1
      %p131 = por %p129, %p130
      %p132 = scmp.ne.s32.totalorder %s124, %s127
      %p133 = scmp.eq.s32.totalorder %s10, 0
      %p134 = por %p132, %p133
      %p135 = scmp.ne.s32.totalorder %s124, %s127
      %p136 = scmp.eq.s32.totalorder %s15, 1
      %p137 = por %p135, %p136
      %p138 = scmp.ne.s32.totalorder %s127, %s128
      %p139 = scmp.eq.s32.totalorder %s15, 0
      %p140 = por %p138, %p139
      %p141 = scmp.ne.s32.totalorder %s127, %s128
      %p142 = scmp.eq.s32.totalorder %s16, 1
      %p143 = por %p141, %p142
      %p145 = scmp.ne.s32.totalorder %s128, %s144
      %p146 = scmp.eq.s32.totalorder %s16, 0
      %p147 = por %p145, %p146
      %p148 = scmp.le.s32.totalorder 1, %s10
      %p149 = scmp.lt.s32.totalorder %s10, 3
      %p150 = pnand %p148, %p149
      %p151 = pneg %p150
      // Predicated region
      $region9: #{tpu_custom_call.1} parent=5 // pred_check
        _
      $region10: #{tpu_custom_call.1} parent=5 // pred_check_branch
        %153 = sbr.rel (%p150) target = $region12
      $region11: #{tpu_custom_call.1} parent=5 // pred_region
        %s154 = ssub.s32 %s10, 1
      $region12: #{tpu_custom_call.1} parent=5 // pred_fallthru
        _
      %p155 = scmp.lt.s32.totalorder %s10, 2
      // Predicated region
      $region13: #{tpu_custom_call.1} parent=5 // pred_check
        %p156 = pneg %p155
      $region14: #{tpu_custom_call.1} parent=5 // pred_check_branch
        %158 = sbr.rel (%p156) target = $region16
      $region15: #{tpu_custom_call.1} parent=5 // pred_region
        // Predicated region
        $region17: #{tpu_custom_call.1} parent=15 // pred_check
          %p159 = pneg %p30
        $region18: #{tpu_custom_call.1} parent=15 // pred_check_branch
          %161 = sbr.rel (%p159) target = $region20
        $region19: #{tpu_custom_call.1} parent=15 // pred_region
          %p162 = scmp.lt.s32.totalorder %s10, 1
          %s163 = scalar_select %p162, %s10, 1
          %s164 = smul.addr %s163, 8
          %s165 = scalar_lea.vmem %s0, %s164
        $region20: #{tpu_custom_call.1} parent=15 // pred_fallthru
          _
        // Predicated region
        $region21: #{tpu_custom_call.1} parent=15 // pred_check
          %p166 = pneg %p56
        $region22: #{tpu_custom_call.1} parent=15 // pred_check_branch
          %168 = sbr.rel (%p166) target = $region24
        $region23: #{tpu_custom_call.1} parent=15 // pred_region
          %p169 = scmp.lt.s32.totalorder %s10, 1
          %s170 = scalar_select %p169, %s10, 1
          %s171 = smul.addr %s170, 8
          %s172 = scalar_lea.vmem %s1, %s171
        $region24: #{tpu_custom_call.1} parent=15 // pred_fallthru
          _
        // Predicated region
        $region25: #{tpu_custom_call.1} parent=15 // pred_check
          %p173 = pneg %p82
        $region26: #{tpu_custom_call.1} parent=15 // pred_check_branch
          %175 = sbr.rel (%p173) target = $region28
        $region27: #{tpu_custom_call.1} parent=15 // pred_region
          %s176 = sand.u32 %s72, 1
          %s177 = sand.u32 %s72, 1
          %s178 = smul.addr %s177, 48
          %s179 = scalar_lea.vmem [#allocation2], %s178
          %s180 = smul.addr %s10, 8
          %s181 = scalar_lea.vmem %s2, %s180
          // Predicated region
          $region29: #{tpu_custom_call.1} parent=27 // pred_check
            _
          $region30: #{tpu_custom_call.1} parent=27 // pred_check_branch
            %183 = sbr.rel (0) target = $region32
          $region31: #{tpu_custom_call.1} parent=27 // pred_region
            // Predicated region
            $region33: #{tpu_custom_call.1} parent=31 // pred_check
              _
            $region34: #{tpu_custom_call.1} parent=31 // pred_check_branch
              %185 = sbr.rel (0) target = $region36
            $region35: #{tpu_custom_call.1} parent=31 // pred_region
              // Predicated region
              $region48: #{tpu_custom_call.1} parent=35 // pred_check
                _
              $region49: #{tpu_custom_call.1} parent=35 // pred_check_branch
                %211 = sbr.rel (0) target = $region51
              $region50: #{tpu_custom_call.1} parent=35 // pred_region
                loop: start=0, step=1, limit=1
                $region52: #{tpu_custom_call.1} parent=50 // loop_pre_header
                  _
                $region53: #{tpu_custom_call.1} parent=50 // loop_header
                  %s213 = sphi 0, %s217
                  %p214 = scmp.ge.s32.totalorder %s213, 1
                  %s218 = sphi %s181, %s181
                  %s219 = sphi %s179, %s179
                $region54: #{tpu_custom_call.1} parent=50 // loop_header_branch
                  %216 = sbr.rel (%p214) target = $region58
                $region55: #{tpu_custom_call.1} parent=50 // loop_body
                  %v220 = vld [vmem:[%s218] sm:$0xff]
                  %221 = vst [vmem:[%s219] sm:$0xff] %v220
                  %v222 = vld [vmem:[%s218 + $0x10] sm:$0xff]
                  %223 = vst [vmem:[%s219 + $0x8] sm:$0xff] %v222
                  %v224 = vld [vmem:[%s218 + $0x20] sm:$0xff]
                  %225 = vst [vmem:[%s219 + $0x10] sm:$0xff] %v224
                  %v226 = vld [vmem:[%s218 + $0x30] sm:$0xff]
                  %227 = vst [vmem:[%s219 + $0x18] sm:$0xff] %v226
                  %v228 = vld [vmem:[%s218 + $0x40] sm:$0xff]
                  %229 = vst [vmem:[%s219 + $0x20] sm:$0xff] %v228
                  %v230 = vld [vmem:[%s218 + $0x50] sm:$0xff]
                  %231 = vst [vmem:[%s219 + $0x28] sm:$0xff] %v230
                $region56: #{tpu_custom_call.1} parent=50 // loop_footer
                  %s217 = sadd.s32 1, %s213
                $region57: #{tpu_custom_call.1} parent=50 // loop_footer_branch
                  %212 = sbr.rel target = $region53
                $region58: #{tpu_custom_call.1} parent=50 // loop_exit
                  _
              $region51: #{tpu_custom_call.1} parent=35 // pred_fallthru
                _
              // Predicated region
              $region59: #{tpu_custom_call.1} parent=35 // pred_check
                _
              $region60: #{tpu_custom_call.1} parent=35 // pred_check_branch
                %233 = sbr.rel target = $region62
              $region61: #{tpu_custom_call.1} parent=35 // pred_region
                _
              $region62: #{tpu_custom_call.1} parent=35 // pred_fallthru
                _
            $region36: #{tpu_custom_call.1} parent=31 // pred_fallthru
              _
            // Predicated region
            $region37: #{tpu_custom_call.1} parent=31 // pred_check
              _
            $region38: #{tpu_custom_call.1} parent=31 // pred_check_branch
              %187 = sbr.rel target = $region40
            $region39: #{tpu_custom_call.1} parent=31 // pred_region
              %s189 = ssub.s32 256, 1
              loop: start=0, step=1, limit=1
              $region41: #{tpu_custom_call.1} parent=39 // loop_pre_header
                _
              $region42: #{tpu_custom_call.1} parent=39 // loop_header
                %s191 = sphi 0, %s195
                %p192 = scmp.ge.s32.totalorder %s191, 1
                %s196 = sphi %s181, %s181
                %s197 = sphi %s179, %s179
              $region43: #{tpu_custom_call.1} parent=39 // loop_header_branch
                %194 = sbr.rel (%p192) target = $region47
              $region44: #{tpu_custom_call.1} parent=39 // loop_body
                %v198 = vld [vmem:[%s196] sm:%s189]
                %199 = vst [vmem:[%s197] sm:%s189] %v198
                %v200 = vld [vmem:[%s196 + $0x10] sm:%s189]
                %201 = vst [vmem:[%s197 + $0x8] sm:%s189] %v200
                %v202 = vld [vmem:[%s196 + $0x20] sm:%s189]
                %203 = vst [vmem:[%s197 + $0x10] sm:%s189] %v202
                %v204 = vld [vmem:[%s196 + $0x30] sm:%s189]
                %205 = vst [vmem:[%s197 + $0x18] sm:%s189] %v204
                %v206 = vld [vmem:[%s196 + $0x40] sm:%s189]
                %207 = vst [vmem:[%s197 + $0x20] sm:%s189] %v206
                %v208 = vld [vmem:[%s196 + $0x50] sm:%s189]
                %209 = vst [vmem:[%s197 + $0x28] sm:%s189] %v208
              $region45: #{tpu_custom_call.1} parent=39 // loop_footer
                %s195 = sadd.s32 1, %s191
              $region46: #{tpu_custom_call.1} parent=39 // loop_footer_branch
                %190 = sbr.rel target = $region42
              $region47: #{tpu_custom_call.1} parent=39 // loop_exit
                _
            $region40: #{tpu_custom_call.1} parent=31 // pred_fallthru
              _
          $region32: #{tpu_custom_call.1} parent=27 // pred_fallthru
            _
          %234 = vnop
        $region28: #{tpu_custom_call.1} parent=15 // pred_fallthru
          _
        // Predicated region
        $region63: #{tpu_custom_call.1} parent=15 // pred_check
          %p235 = pneg %p108
        $region64: #{tpu_custom_call.1} parent=15 // pred_check_branch
          %237 = sbr.rel (%p235) target = $region66
        $region65: #{tpu_custom_call.1} parent=15 // pred_region
          %p238 = scmp.lt.s32.totalorder %s10, 1
          %s239 = scalar_select %p238, %s10, 1
          %s240 = smul.addr %s239, 8
          %s241 = scalar_lea.vmem %s3, %s240
        $region66: #{tpu_custom_call.1} parent=15 // pred_fallthru
          _
      $region16: #{tpu_custom_call.1} parent=5 // pred_fallthru
        _
      %p242 = scmp.le.s32.totalorder 1, %s10
      %p243 = scmp.lt.s32.totalorder %s10, 3
      %p244 = pnand %p242, %p243
      %p245 = pneg %p244
      // Predicated region
      $region67: #{tpu_custom_call.1} parent=5 // pred_check
        _
      $region68: #{tpu_custom_call.1} parent=5 // pred_check_branch
        %247 = sbr.rel (%p244) target = $region70
      $region69: #{tpu_custom_call.1} parent=5 // pred_region
        %s248 = ssub.s32 %s10, 1
        %s249 = sand.u32 %s75, 1
        %s250 = sand.u32 %s75, 1
        %s251 = smul.addr %s250, 48
        %s252 = scalar_lea.vmem [#allocation2], %s251
        // Predicated region
        $region71: #{tpu_custom_call.1} parent=69 // pred_check
          %p253 = pneg %p88
        $region72: #{tpu_custom_call.1} parent=69 // pred_check_branch
          %255 = sbr.rel (%p253) target = $region74
        $region73: #{tpu_custom_call.1} parent=69 // pred_region
          _
        $region74: #{tpu_custom_call.1} parent=69 // pred_fallthru
          _
        %p256 = scmp.lt.s32.totalorder %s15, 1
        %s257 = scalar_select %p256, %s15, 1
        %s258 = smul.addr %s257, 8
        %s259 = scalar_lea.vmem %s0, %s258
        %p260 = pneg %p36
        %p261 = pneg %p33
        %p262 = scmp.lt.s32.totalorder %s15, 1
        %s263 = scalar_select %p262, %s15, 1
        %s264 = smul.addr %s263, 8
        %s265 = scalar_lea.vmem %s1, %s264
        %p266 = pneg %p62
        %p267 = pneg %p59
        %s268 = sand.u32 %s75, 1
        %s269 = sand.u32 %s75, 1
        %s270 = smul.addr %s269, 48
        %s271 = scalar_lea.vmem [#allocation2], %s270
        %p272 = pneg %p88
        %p273 = pneg %p85
        %p274 = scmp.lt.s32.totalorder %s15, 1
        %s275 = scalar_select %p274, %s15, 1
        %s276 = smul.addr %s275, 8
        %s277 = scalar_lea.vmem %s3, %s276
        %p278 = pneg %p114
        %p279 = pneg %p111
        %p280 = pneg %p140
        %p281 = pneg %p137
        %p282 = scmp.lt.s32.totalorder %s15, 1
        %s283 = scalar_select %p282, %s15, 1
        %s284 = smul.addr %s283, 8
        %s285 = scalar_lea.vmem %s4, %s284
        %p286 = scmp.lt.s32.totalorder %s15, 1
        %s287 = scalar_select %p286, %s15, 1
        %s288 = smul.addr %s287, 8
        %s289 = scalar_lea.vmem %s0, %s288
        %p290 = scmp.lt.s32.totalorder %s15, 1
        %s291 = scalar_select %p290, %s15, 1
        %s292 = smul.addr %s291, 8
        %s293 = scalar_lea.vmem %s1, %s292
        %p294 = scmp.lt.s32.totalorder %s15, 1
        %s295 = scalar_select %p294, %s15, 1
        %s296 = smul.addr %s295, 8
        %s297 = scalar_lea.vmem %s3, %s296
        %p298 = scmp.lt.s32.totalorder %s15, 1
        %s299 = scalar_select %p298, %s15, 1
        %s300 = smul.addr %s299, 8
        %s301 = scalar_lea.vmem %s4, %s300
        %v302 = vld [vmem:[%s293] sm:$0xff]
        %v303 = vld [vmem:[%s297] sm:$0xff]
        %v304 = vld [vmem:[%s252] sm:$0xff]
        %306 = vset.pattern.permute.xlu0 0
        %307 = vperm.xlu0 %306, %v303
        %v308 = vpop.permute.xlu0 %307
        %v310 = vmul.f32 %v304, %v308
        %s311 = scalar_lea.vmem %s252, 8 [#allocation2]
        %v312 = vld [vmem:[%s311] sm:$0xff]
        %313 = vset.pattern.permute.xlu0 1
        %314 = vperm.xlu0 %313, %v303
        %v315 = vpop.permute.xlu0 %314
        %v317 = vmul.f32 %v312, %v315
        %v318 = vadd.f32 %v310, %v317
        %s319 = scalar_lea.vmem %s252, 16 [#allocation2]
        %v320 = vld [vmem:[%s319] sm:$0xff]
        %321 = vset.pattern.permute.xlu0 2
        %322 = vperm.xlu0 %321, %v303
        %v323 = vpop.permute.xlu0 %322
        %v325 = vmul.f32 %v320, %v323
        %v326 = vadd.f32 %v318, %v325
        %s327 = scalar_lea.vmem %s252, 24 [#allocation2]
        %v328 = vld [vmem:[%s327] sm:$0xff]
        %329 = vset.pattern.permute.xlu0 3
        %330 = vperm.xlu0 %329, %v303
        %v331 = vpop.permute.xlu0 %330
        %v333 = vmul.f32 %v328, %v331
        %v334 = vadd.f32 %v326, %v333
        %s335 = scalar_lea.vmem %s252, 32 [#allocation2]
        %v336 = vld [vmem:[%s335] sm:$0xff]
        %337 = vset.pattern.permute.xlu0 4
        %338 = vperm.xlu0 %337, %v303
        %v339 = vpop.permute.xlu0 %338
        %v341 = vmul.f32 %v336, %v339
        %v342 = vadd.f32 %v334, %v341
        %s343 = scalar_lea.vmem %s252, 40 [#allocation2]
        %v344 = vld [vmem:[%s343] sm:$0xff]
        %345 = vset.pattern.permute.xlu0 5
        %346 = vperm.xlu0 %345, %v303
        %v347 = vpop.permute.xlu0 %346
        %v349 = vmul.f32 %v344, %v347
        %v350 = vadd.f32 %v342, %v349
        %v351 = vld [vmem:[%s289] sm:$0xff]
        %v352 = vadd.f32 %v351, %v350
        %v353 = vmul.f32 %v350, %v302
        %vm354 = vcmask 261120
        %v355 = vsel %vm354, %v353, 0.0
        %356 = vadd.xlane.f32.xlu0 %v355
        %v357 = vpop.xlane.xlu0 %356
        %v358 = vmul.f32 %v357, %v302
        %v359 = vsub.f32 %v352, %v358
        %v360 = vmul.f32 %v359, %v359
        %v361 = vsel %vm354, %v360, 0.0
        %362 = vadd.xlane.f32.xlu0 %v361
        %v363 = vpop.xlane.xlu0 %362
        %v364 = vrsqrt.pop %v363
        %v365 = vmul.f32 %v364, %v363
        %v366 = vmul.f32 %v365, %v364
        %v367 = vmul.f32 0.5, %v366
        %v368 = vsub.f32 1.5, %v367
        %v369 = vmul.f32 %v364, %v368
        %v370 = vmul.f32 %v363, %v369
        %vm371 = vcmp.eq.f32.partialorder %v363, inf
        %v372 = vsel %vm371, %v363, %v370
        %vm373 = vcmp.eq.f32.partialorder %v363, 0.0
        %v374 = vand.u32 %v363, 2147483648
        %v375 = vsel %vm373, %v374, %v372
        %v376 = vsub.f32 0.0, %v375
        %vm377 = vcmask 7168
        %378 = vst.msk [vmem:[%s301] sm:$0xff] %vm377, %v376
        %p379 = scmp.lt.s32.totalorder %s15, 1
        %s380 = scalar_select %p379, %s15, 1
        %s381 = smul.addr %s380, 8
        %s382 = scalar_lea.vmem %s4, %s381
        // Predicated region
        $region75: #{tpu_custom_call.1} parent=69 // pred_check
          %p383 = pneg %p137
        $region76: #{tpu_custom_call.1} parent=69 // pred_check_branch
          %385 = sbr.rel (%p383) target = $region78
        $region77: #{tpu_custom_call.1} parent=69 // pred_region
          _
        $region78: #{tpu_custom_call.1} parent=69 // pred_fallthru
          _
      $region70: #{tpu_custom_call.1} parent=5 // pred_fallthru
        _
      %p386 = scmp.le.s32.totalorder 2, %s10
      // Predicated region
      $region79: #{tpu_custom_call.1} parent=5 // pred_check
        %p387 = pneg %p386
      $region80: #{tpu_custom_call.1} parent=5 // pred_check_branch
        %389 = sbr.rel (%p387) target = $region82
      $region81: #{tpu_custom_call.1} parent=5 // pred_region
        %s390 = ssub.s32 %s10, 2
        // Predicated region
        $region83: #{tpu_custom_call.1} parent=81 // pred_check
          %p391 = pneg %p143
        $region84: #{tpu_custom_call.1} parent=81 // pred_check_branch
          %393 = sbr.rel (%p391) target = $region86
        $region85: #{tpu_custom_call.1} parent=81 // pred_region
          %p394 = scmp.lt.s32.totalorder %s16, 1
          %s395 = scalar_select %p394, %s16, 1
          %s396 = smul.addr %s395, 8
          %s397 = scalar_lea.vmem %s4, %s396
        $region86: #{tpu_custom_call.1} parent=81 // pred_fallthru
          _
      $region82: #{tpu_custom_call.1} parent=5 // pred_fallthru
        _
    $region6: #{tpu_custom_call.1} parent=1 // loop_footer
      %s14 = sadd.s32 1, %s10
    $region7: #{tpu_custom_call.1} parent=1 // loop_footer_branch
      %9 = sbr.rel target = $region3
    $region8: #{tpu_custom_call.1} parent=1 // loop_exit
      _

</llo_original>
